<compile_context>
chip_gen: v7x
topology: tpu7x:2x2x1
jax: 0.10.0
libtpu: 0.0.40
codegen_flags: <defaults>
</compile_context>

<pallas_src>
import functools

import jax
import jax.numpy as jnp
from jax.experimental import pallas as pl
from jax.experimental.pallas import tpu as pltpu

_LANE = 128       # vreg lane width (last dim)
_SUBLANE = 8      # vreg sublane width (second-to-last dim)
_SMALL_BATCH_MIN = 1024          # below this, fused XLA beats a custom kernel
_SCOPED_VMEM_DEFAULT = 16 << 20  # v5e scoped-VMEM default (most conservative)
_VMEM_BUDGET = 12 << 20          # tile-sizing budget (headroom under the above)


def _round_up(n, m):
    return (n + m - 1) // m * m


def _vmem_bytes_per_row(D, H1, H2, C):
    """Conservative per-batch-row VMEM estimate (VMEM lane-pads to 128)."""
    Dp, H1p, H2p, Cp = (_round_up(v, _LANE) for v in (D, H1, H2, C))
    return (2 * Dp * 4              # double-buffered f32 x tile
            + Dp * 2                # in-kernel bf16 copy of the x tile
            + 2 * Cp * 4            # double-buffered f32 out tile
            + 2 * (H1p + H2p) * 4)  # f32 + bf16 h1/h2 temporaries


def _weight_vmem_bytes(D, H1, H2, C):
    return (D * H1 + H1 * H2 + H2 * C) * 2 + (H1 + H2 + C) * 4


def _pick_batch_tile(B, D, H1, H2, C, requested=None):
    if requested is None:
        bpr = _vmem_bytes_per_row(D, H1, H2, C)
        tb = min(4096, max(_SUBLANE, _VMEM_BUDGET // bpr))
        if tb >= 256:                       # keep the default tile a round number
            tb = (tb // 256) * 256
    else:
        tb = int(requested)
    tb = min(tb, _round_up(B, _SUBLANE))    # never bigger than the (rounded) batch
    return max(_SUBLANE, _round_up(tb, _SUBLANE))


def _mlp_kernel(x_ref, w1_ref, b1_ref, w2_ref, b2_ref, w3_ref, b3_ref, o_ref):
    # f32 -> bf16 cast of the activation tile happens here (VPU, hidden under DMA).
    x = x_ref[...].astype(w1_ref.dtype)
    # Layer 1: bf16 operands on the MXU, f32 accumulate; bias + ReLU in f32 (VPU).
    h1 = jnp.dot(x, w1_ref[...], preferred_element_type=jnp.float32)
    h1 = jnp.maximum(h1 + b1_ref[...], 0.0)
    # Layer 2
    h2 = jnp.dot(h1.astype(w2_ref.dtype), w2_ref[...],
                 preferred_element_type=jnp.float32)
    h2 = jnp.maximum(h2 + b2_ref[...], 0.0)
    # Layer 3 (logits, no activation), stored f32 straight into the (tb, C) block.
    o_ref[...] = (jnp.dot(h2.astype(w3_ref.dtype), w3_ref[...],
                          preferred_element_type=jnp.float32)
                  + b3_ref[...]).astype(o_ref.dtype)


def _forward_pallas(x, p, batch_tile):
    B, D = x.shape
    H1 = p["w1"].shape[1]
    H2 = p["w2"].shape[1]
    C = p["w3"].shape[1]

    tb = _pick_batch_tile(B, D, H1, H2, C, batch_tile)
    grid = (pl.cdiv(B, tb),)  # ragged last tile is masked by Pallas

    flops = 2 * B * (D * H1 + H1 * H2 + H2 * C)
    bytes_accessed = (x.size * x.dtype.itemsize
                      + _weight_vmem_bytes(D, H1, H2, C)
                      + B * C * 4)

    est_vmem = _vmem_bytes_per_row(D, H1, H2, C) * tb + _weight_vmem_bytes(D, H1, H2, C)
    cp_kwargs = dict(dimension_semantics=("parallel",))  # batch-parallel (v7x 2 TCs)
    if est_vmem > _SCOPED_VMEM_DEFAULT:  # only for explicitly huge user tiles
        cp_kwargs["vmem_limit_bytes"] = int(est_vmem * 1.25)

    return pl.pallas_call(
        _mlp_kernel,
        out_shape=jax.ShapeDtypeStruct((B, C), jnp.float32),
        grid_spec=pltpu.PrefetchScalarGridSpec(
            num_scalar_prefetch=0,
            grid=grid,
            in_specs=[
                pl.BlockSpec((tb, D), lambda i: (i, 0)),    # x tile over batch
                pl.BlockSpec((D, H1), lambda i: (0, 0)),    # W1 (grid-invariant, VMEM-resident)
                pl.BlockSpec((1, H1), lambda i: (0, 0)),    # b1
                pl.BlockSpec((H1, H2), lambda i: (0, 0)),   # W2
                pl.BlockSpec((1, H2), lambda i: (0, 0)),    # b2
                pl.BlockSpec((H2, C), lambda i: (0, 0)),    # W3
                pl.BlockSpec((1, C), lambda i: (0, 0)),     # b3
            ],
            out_specs=pl.BlockSpec((tb, C), lambda i: (i, 0)),
        ),
        compiler_params=pltpu.CompilerParams(**cp_kwargs),
        cost_estimate=pl.CostEstimate(flops=flops, transcendentals=0,
                                      bytes_accessed=bytes_accessed),
    )(x, p["w1"], p["b1"], p["w2"], p["b2"], p["w3"], p["b3"])


def _forward_xla(x, p):
    """Small-batch fast path with the same bf16-operand / f32-accumulate math."""
    cd = p["w1"].dtype
    h = jnp.maximum(jnp.dot(x.astype(cd), p["w1"],
                            preferred_element_type=jnp.float32) + p["b1"], 0.0)
    h = jnp.maximum(jnp.dot(h.astype(cd), p["w2"],
                            preferred_element_type=jnp.float32) + p["b2"], 0.0)
    return jnp.dot(h.astype(cd), p["w3"],
                   preferred_element_type=jnp.float32) + p["b3"]


@functools.partial(jax.jit, static_argnames=("batch_tile", "force_pallas"))
def gesture_classifier_forward(x, prepared_params, *, batch_tile=None,
                               force_pallas=False):
    """Forward pass of GestureClassifier.

    x: [B, input_size] float32 (bf16 also accepted)
    prepared_params: output of prepare_params() -- bf16 weights [in, out],
                     f32 biases [1, out].
    returns logits [B, num_classes] float32.
    """
    B = x.shape[0]
    if force_pallas or B >= _SMALL_BATCH_MIN:
        return _forward_pallas(x, prepared_params, batch_tile)
    return _forward_xla(x, prepared_params)


def init_params(key, input_size, num_classes, dtype=jnp.float32):
    """Matches the PyTorch module: kaiming_normal_ weights (fan_in, relu gain),
    zero biases. Weights returned already transposed to [in, out]."""
    h1 = int(input_size / 4)
    h2 = int(input_size / 8)
    k1, k2, k3 = jax.random.split(key, 3)

    def kaiming(k, fan_in, fan_out):
        std = (2.0 / fan_in) ** 0.5
        return (std * jax.random.normal(k, (fan_in, fan_out))).astype(dtype)

    return dict(
        w1=kaiming(k1, input_size, h1), b1=jnp.zeros((1, h1), dtype),
        w2=kaiming(k2, h1, h2),         b2=jnp.zeros((1, h2), dtype),
        w3=kaiming(k3, h2, num_classes), b3=jnp.zeros((1, num_classes), dtype),
    )


def prepare_params(params, compute_dtype=jnp.bfloat16):
    """One-time parameter prep (outside the per-call hot path): cast weights to
    bf16 MXU operands, keep biases f32."""
    return dict(
        w1=params["w1"].astype(compute_dtype), b1=params["b1"].astype(jnp.float32),
        w2=params["w2"].astype(compute_dtype), b2=params["b2"].astype(jnp.float32),
        w3=params["w3"].astype(compute_dtype), b3=params["b3"].astype(jnp.float32),
    )


def _reference_forward_f32(x, p):
    h = jnp.maximum(x @ p["w1"] + p["b1"], 0.0)
    h = jnp.maximum(h @ p["w2"] + p["b2"], 0.0)
    return h @ p["w3"] + p["b3"]


def _reference_forward_bf16(x, p):
    cd = jnp.bfloat16
    h = jnp.dot(x.astype(cd), p["w1"].astype(cd),
                preferred_element_type=jnp.float32) + p["b1"]
    h = jnp.maximum(h, 0.0)
    h = jnp.dot(h.astype(cd), p["w2"].astype(cd),
                preferred_element_type=jnp.float32) + p["b2"]
    h = jnp.maximum(h, 0.0)
    return jnp.dot(h.astype(cd), p["w3"].astype(cd),
                   preferred_element_type=jnp.float32) + p["b3"]


if __name__ == "__main__":
    INPUT_SIZE = 256     # -> hidden1 = 64, hidden2 = 32
    NUM_CLASSES = 10
    BATCH = 200          # small; exercises grid > 1 and a ragged last tile below

    key = jax.random.PRNGKey(0)
    kx, kp = jax.random.split(key)
    x = jax.random.normal(kx, (BATCH, INPUT_SIZE), dtype=jnp.float32)
    raw_params = init_params(kp, INPUT_SIZE, NUM_CLASSES)
    params = prepare_params(raw_params)

    # Pallas path (forced, with a small tile so the grid has several steps and a
    # masked ragged last tile: 200 rows, 64-row tiles -> grid of 4).
    out = gesture_classifier_forward(x, params, batch_tile=64, force_pallas=True)
    out = jax.block_until_ready(out)
    assert out.shape == (BATCH, NUM_CLASSES)

    # Primary check: matches a reference using the same bf16-operand /
    # f32-accumulate math as the kernel.
    ref_bf16 = _reference_forward_bf16(x, raw_params)
    assert jnp.allclose(out, ref_bf16, atol=1e-2, rtol=1e-2), \
        "mismatch vs bf16/f32-acc reference"

    # Sanity check: close to the pure-f32 PyTorch-equivalent forward
    # (loose tolerance covers bf16 operand rounding).
    ref_f32 = _reference_forward_f32(x, raw_params)
    assert jnp.allclose(out, ref_f32, atol=1e-1, rtol=1e-1), \
        "mismatch vs f32 reference"

    # Small-batch fast path (default dispatch for B < 1024) must agree too.
    out_xla = jax.block_until_ready(gesture_classifier_forward(x, params))
    assert jnp.allclose(out, out_xla, atol=1e-2, rtol=1e-2), \
        "pallas path vs XLA fast path mismatch"

    print("KERNEL_OK")
</pallas_src>

<mosaic_0001>
module attributes {stable_mosaic.version = 11 : i64} {
  func.func @_mlp_kernel(%arg0: i32, %arg1: memref<64x256xf32, #tpu.memory_space<vmem>>, %arg2: memref<256x64xbf16, #tpu.memory_space<vmem>>, %arg3: memref<1x64xf32, #tpu.memory_space<vmem>>, %arg4: memref<64x32xbf16, #tpu.memory_space<vmem>>, %arg5: memref<1x32xf32, #tpu.memory_space<vmem>>, %arg6: memref<32x10xbf16, #tpu.memory_space<vmem>>, %arg7: memref<1x10xf32, #tpu.memory_space<vmem>>, %arg8: memref<64x10xf32, #tpu.memory_space<vmem>>) attributes {dimension_semantics = [#tpu.dimension_semantics<parallel>], iteration_bounds = array<i64: 4>, scalar_prefetch = 0 : i64, scratch_operands = 0 : i64, tpu.core_type = #tpu.core_type<tc>, window_params = [{transform_indices = @transform_0, window_bounds = array<i64: 64, 256>}, {pipeline_mode = #tpu.pipeline_mode<synchronous>, transform_indices = @transform_1, window_bounds = array<i64: 256, 64>}, {pipeline_mode = #tpu.pipeline_mode<synchronous>, transform_indices = @transform_2, window_bounds = array<i64: 1, 64>}, {pipeline_mode = #tpu.pipeline_mode<synchronous>, transform_indices = @transform_3, window_bounds = array<i64: 64, 32>}, {pipeline_mode = #tpu.pipeline_mode<synchronous>, transform_indices = @transform_4, window_bounds = array<i64: 1, 32>}, {pipeline_mode = #tpu.pipeline_mode<synchronous>, transform_indices = @transform_5, window_bounds = array<i64: 32, 10>}, {pipeline_mode = #tpu.pipeline_mode<synchronous>, transform_indices = @transform_6, window_bounds = array<i64: 1, 10>}, {transform_indices = @transform_7, window_bounds = array<i64: 64, 10>}]} {
    %c0 = arith.constant 0 : index
    %c0_0 = arith.constant 0 : index
    %0 = vector.load %arg1[%c0, %c0_0] : memref<64x256xf32, #tpu.memory_space<vmem>>, vector<64x256xf32>
    %1 = arith.truncf %0 : vector<64x256xf32> to vector<64x256xbf16>
    %c0_1 = arith.constant 0 : index
    %c0_2 = arith.constant 0 : index
    %2 = vector.load %arg2[%c0_1, %c0_2] : memref<256x64xbf16, #tpu.memory_space<vmem>>, vector<256x64xbf16>
    %cst = arith.constant dense<0.000000e+00> : vector<64x64xf32>
    %3 = tpu.matmul %1, %2, %cst {dimension_numbers = #tpu.dot_dimension_numbers<[1], [0], [0], [1], [0, 0, 1, 1], [], []>} : vector<64x256xbf16>, vector<256x64xbf16>, vector<64x64xf32> -> vector<64x64xf32>
    %c0_3 = arith.constant 0 : index
    %c0_4 = arith.constant 0 : index
    %4 = vector.load %arg3[%c0_3, %c0_4] : memref<1x64xf32, #tpu.memory_space<vmem>>, vector<1x64xf32>
    %5 = vector.broadcast %4 : vector<1x64xf32> to vector<64x64xf32>
    %6 = arith.addf %3, %5 : vector<64x64xf32>
    %cst_5 = arith.constant 0.000000e+00 : f32
    %7 = vector.broadcast %cst_5 : f32 to vector<64x64xf32>
    %8 = arith.maximumf %6, %7 : vector<64x64xf32>
    %9 = arith.truncf %8 : vector<64x64xf32> to vector<64x64xbf16>
    %c0_6 = arith.constant 0 : index
    %c0_7 = arith.constant 0 : index
    %10 = vector.load %arg4[%c0_6, %c0_7] : memref<64x32xbf16, #tpu.memory_space<vmem>>, vector<64x32xbf16>
    %cst_8 = arith.constant dense<0.000000e+00> : vector<64x32xf32>
    %11 = tpu.matmul %9, %10, %cst_8 {dimension_numbers = #tpu.dot_dimension_numbers<[1], [0], [0], [1], [0, 0, 1, 1], [], []>} : vector<64x64xbf16>, vector<64x32xbf16>, vector<64x32xf32> -> vector<64x32xf32>
    %c0_9 = arith.constant 0 : index
    %c0_10 = arith.constant 0 : index
    %12 = vector.load %arg5[%c0_9, %c0_10] : memref<1x32xf32, #tpu.memory_space<vmem>>, vector<1x32xf32>
    %13 = vector.broadcast %12 : vector<1x32xf32> to vector<64x32xf32>
    %14 = arith.addf %11, %13 : vector<64x32xf32>
    %cst_11 = arith.constant 0.000000e+00 : f32
    %15 = vector.broadcast %cst_11 : f32 to vector<64x32xf32>
    %16 = arith.maximumf %14, %15 : vector<64x32xf32>
    %17 = arith.truncf %16 : vector<64x32xf32> to vector<64x32xbf16>
    %c0_12 = arith.constant 0 : index
    %c0_13 = arith.constant 0 : index
    %18 = vector.load %arg6[%c0_12, %c0_13] : memref<32x10xbf16, #tpu.memory_space<vmem>>, vector<32x10xbf16>
    %cst_14 = arith.constant dense<0.000000e+00> : vector<64x10xf32>
    %19 = tpu.matmul %17, %18, %cst_14 {dimension_numbers = #tpu.dot_dimension_numbers<[1], [0], [0], [1], [0, 0, 1, 1], [], []>} : vector<64x32xbf16>, vector<32x10xbf16>, vector<64x10xf32> -> vector<64x10xf32>
    %c0_15 = arith.constant 0 : index
    %c0_16 = arith.constant 0 : index
    %20 = vector.load %arg7[%c0_15, %c0_16] : memref<1x10xf32, #tpu.memory_space<vmem>>, vector<1x10xf32>
    %21 = vector.broadcast %20 : vector<1x10xf32> to vector<64x10xf32>
    %22 = arith.addf %19, %21 : vector<64x10xf32>
    %c0_17 = arith.constant 0 : index
    %c0_18 = arith.constant 0 : index
    %23 = vector.load %arg8[%c0_17, %c0_18] : memref<64x10xf32, #tpu.memory_space<vmem>>, vector<64x10xf32>
    tpu.vector_store %arg8[%c0_17, %c0_18], %22 {strides = array<i32>} : memref<64x10xf32, #tpu.memory_space<vmem>>, vector<64x10xf32>,
    return
  }
  func.func @transform_0(%arg0: i32) -> (i32, i32) {
    %c0_i32 = arith.constant 0 : i32
    %c0_i32_0 = arith.constant 0 : i32
    return %arg0, %c0_i32 : i32, i32
  }
  func.func @transform_1(%arg0: i32) -> (i32, i32) {
    %c0_i32 = arith.constant 0 : i32
    %c0_i32_0 = arith.constant 0 : i32
    %c0_i32_1 = arith.constant 0 : i32
    return %c0_i32, %c0_i32_0 : i32, i32
  }
  func.func @transform_2(%arg0: i32) -> (i32, i32) {
    %c0_i32 = arith.constant 0 : i32
    %c0_i32_0 = arith.constant 0 : i32
    %c0_i32_1 = arith.constant 0 : i32
    return %c0_i32, %c0_i32_0 : i32, i32
  }
  func.func @transform_3(%arg0: i32) -> (i32, i32) {
    %c0_i32 = arith.constant 0 : i32
    %c0_i32_0 = arith.constant 0 : i32
    %c0_i32_1 = arith.constant 0 : i32
    return %c0_i32, %c0_i32_0 : i32, i32
  }
  func.func @transform_4(%arg0: i32) -> (i32, i32) {
    %c0_i32 = arith.constant 0 : i32
    %c0_i32_0 = arith.constant 0 : i32
    %c0_i32_1 = arith.constant 0 : i32
    return %c0_i32, %c0_i32_0 : i32, i32
  }
  func.func @transform_5(%arg0: i32) -> (i32, i32) {
    %c0_i32 = arith.constant 0 : i32
    %c0_i32_0 = arith.constant 0 : i32
    %c0_i32_1 = arith.constant 0 : i32
    return %c0_i32, %c0_i32_0 : i32, i32
  }
  func.func @transform_6(%arg0: i32) -> (i32, i32) {
    %c0_i32 = arith.constant 0 : i32
    %c0_i32_0 = arith.constant 0 : i32
    %c0_i32_1 = arith.constant 0 : i32
    return %c0_i32, %c0_i32_0 : i32, i32
  }
  func.func @transform_7(%arg0: i32) -> (i32, i32) {
    %c0_i32 = arith.constant 0 : i32
    %c0_i32_0 = arith.constant 0 : i32
    return %arg0, %c0_i32 : i32, i32
  }
}

</mosaic_0001>

<llo_original>
// kernel: gesture_classifier_forward.1
$region0: #{gesture_classifier_forward.1}
  #allocation0 [shape = 'u32[]', space=smem, size = 0x4, offset = 0x4, fixed_abs, tag = 'smem constant byte address 0x4 - core index']
  #allocation1 [shape = 'u32[144,128]{1,0:T(1,128)}', space=vmem, size = 0x12000, scoped, tag = 'internal scratch']
  %s0 = inlined_call_operand.hbm [shape: f32[200,256], index: 0, kind: input, shape index: {}]
  %s1 = inlined_call_operand.vmem [shape: bf16[256,64], index: 1, kind: input, shape index: {}]
  %s2 = inlined_call_operand.vmem [shape: f32[1,64], index: 2, kind: input, shape index: {}]
  %s3 = inlined_call_operand.vmem [shape: bf16[64,32], index: 3, kind: input, shape index: {}]
  %s4 = inlined_call_operand.vmem [shape: f32[1,32], index: 4, kind: input, shape index: {}]
  %s5 = inlined_call_operand.vmem [shape: bf16[32,10], index: 5, kind: input, shape index: {}]
  %s6 = inlined_call_operand.vmem [shape: f32[1,10], index: 6, kind: input, shape index: {}]
  %s7 = inlined_call_operand.vmem [shape: f32[200,10], index: 7, kind: output, shape index: {}]
  %s8 = sld [smem:[#allocation0]]
  $region113: #{gesture_classifier_forward.1} parent=0
    _
  %s10 = ssub.s32 1, %s8
  %s11 = scalar_select 0, %s10, %s8
  $region1: #{gesture_classifier_forward.1} parent=0
    #allocation2 [shape = 'u8[131072]{0}', space=vmem, size = 0x20000, scoped, tag = 'input window, operand 0']
    #allocation3 [shape = 's32[2]{0}', space=sflag, size = 0x8, scoped, tag = 'scoped memory for gesture_classifier_forward.1']
    #allocation4 [shape = 'u8[65536]{0}', space=vmem, size = 0x10000, scoped, tag = 'output window, operand 0']
    %12 = vsyncpa [#allocation3], 0
    %s13 = scalar_lea.sflag [#allocation3], 1
    %14 = vsyncpa %s13, 0
    loop: start=0, step=1, limit=6
    $region2: #{gesture_classifier_forward.1} parent=1 // loop_pre_header
      _
    $region3: #{gesture_classifier_forward.1} parent=1 // loop_header
      %s16 = sphi 0, %s20
      %p17 = scmp.ge.s32.totalorder %s16, 6
      %s26 = sphi 0, %s28
      %s29 = sphi 0, %s26
      %s30 = sphi 0, %s29
      %s46 = sphi 0, %s30
      %s50 = sphi 0, %s50
      %s52 = sphi 0, %s50
      %s53 = sphi 0, %s52
      %s67 = sphi 0, %s53
      %s71 = sphi 0, %s71
      %s73 = sphi 0, %s71
      %s74 = sphi 0, %s73
      %s88 = sphi 0, %s74
      %s92 = sphi 0, %s92
      %s94 = sphi 0, %s92
      %s95 = sphi 0, %s94
      %s109 = sphi 0, %s95
      %s113 = sphi 0, %s113
      %s115 = sphi 0, %s113
      %s116 = sphi 0, %s115
      %s130 = sphi 0, %s116
      %s134 = sphi 0, %s134
      %s136 = sphi 0, %s134
      %s137 = sphi 0, %s136
      %s151 = sphi 0, %s137
      %s155 = sphi 0, %s155
      %s157 = sphi 0, %s155
      %s158 = sphi 0, %s157
      %s172 = sphi 0, %s158
      %s178 = sphi 0, %s180
      %s181 = sphi 0, %s178
      %s182 = sphi 0, %s181
      %s198 = sphi 0, %s182
    $region4: #{gesture_classifier_forward.1} parent=1 // loop_header_branch
      %19 = sbr.rel (%p17) target = $region8
    $region5: #{gesture_classifier_forward.1} parent=1 // loop_body
      %s21 = ssub.s32 %s16, 1
      %s22 = ssub.s32 %s16, 2
      %s23 = sadd.s32 %s16, 1
      %s24 = ssub.s32 %s16, %s23
      %p25 = scmp.eq.s32.totalorder %s24, 0
      %s27 = sadd.s32 %s26, 1
      %s28 = scalar_select %p25, %s26, %s27
      %p31 = pneg %p25
      %p32 = scmp.eq.s32.totalorder %s16, 3
      %p33 = por %p31, %p32
      %p34 = scmp.ne.s32.totalorder %s26, %s29
      %p35 = scmp.eq.s32.totalorder %s16, 0
      %p36 = por %p34, %p35
      %p37 = scmp.ne.s32.totalorder %s26, %s29
      %p38 = scmp.eq.s32.totalorder %s21, 3
      %p39 = por %p37, %p38
      %p40 = scmp.ne.s32.totalorder %s29, %s30
      %p41 = scmp.eq.s32.totalorder %s21, 0
      %p42 = por %p40, %p41
      %p43 = scmp.ne.s32.totalorder %s29, %s30
      %p44 = scmp.eq.s32.totalorder %s22, 3
      %p45 = por %p43, %p44
      %p47 = scmp.ne.s32.totalorder %s30, %s46
      %p48 = scmp.eq.s32.totalorder %s22, 0
      %p49 = por %p47, %p48
      %s51 = sadd.s32 %s50, 1
      %p54 = scmp.eq.s32.totalorder %s16, 3
      %p55 = scmp.ne.s32.totalorder %s50, %s52
      %p56 = scmp.eq.s32.totalorder %s16, 0
      %p57 = por %p55, %p56
      %p58 = scmp.ne.s32.totalorder %s50, %s52
      %p59 = scmp.eq.s32.totalorder %s21, 3
      %p60 = por %p58, %p59
      %p61 = scmp.ne.s32.totalorder %s52, %s53
      %p62 = scmp.eq.s32.totalorder %s21, 0
      %p63 = por %p61, %p62
      %p64 = scmp.ne.s32.totalorder %s52, %s53
      %p65 = scmp.eq.s32.totalorder %s22, 3
      %p66 = por %p64, %p65
      %p68 = scmp.ne.s32.totalorder %s53, %s67
      %p69 = scmp.eq.s32.totalorder %s22, 0
      %p70 = por %p68, %p69
      %s72 = sadd.s32 %s71, 1
      %p75 = scmp.eq.s32.totalorder %s16, 3
      %p76 = scmp.ne.s32.totalorder %s71, %s73
      %p77 = scmp.eq.s32.totalorder %s16, 0
      %p78 = por %p76, %p77
      %p79 = scmp.ne.s32.totalorder %s71, %s73
      %p80 = scmp.eq.s32.totalorder %s21, 3
      %p81 = por %p79, %p80
      %p82 = scmp.ne.s32.totalorder %s73, %s74
      %p83 = scmp.eq.s32.totalorder %s21, 0
      %p84 = por %p82, %p83
      %p85 = scmp.ne.s32.totalorder %s73, %s74
      %p86 = scmp.eq.s32.totalorder %s22, 3
      %p87 = por %p85, %p86
      %p89 = scmp.ne.s32.totalorder %s74, %s88
      %p90 = scmp.eq.s32.totalorder %s22, 0
      %p91 = por %p89, %p90
      %s93 = sadd.s32 %s92, 1
      %p96 = scmp.eq.s32.totalorder %s16, 3
      %p97 = scmp.ne.s32.totalorder %s92, %s94
      %p98 = scmp.eq.s32.totalorder %s16, 0
      %p99 = por %p97, %p98
      %p100 = scmp.ne.s32.totalorder %s92, %s94
      %p101 = scmp.eq.s32.totalorder %s21, 3
      %p102 = por %p100, %p101
      %p103 = scmp.ne.s32.totalorder %s94, %s95
      %p104 = scmp.eq.s32.totalorder %s21, 0
      %p105 = por %p103, %p104
      %p106 = scmp.ne.s32.totalorder %s94, %s95
      %p107 = scmp.eq.s32.totalorder %s22, 3
      %p108 = por %p106, %p107
      %p110 = scmp.ne.s32.totalorder %s95, %s109
      %p111 = scmp.eq.s32.totalorder %s22, 0
      %p112 = por %p110, %p111
      %s114 = sadd.s32 %s113, 1
      %p117 = scmp.eq.s32.totalorder %s16, 3
      %p118 = scmp.ne.s32.totalorder %s113, %s115
      %p119 = scmp.eq.s32.totalorder %s16, 0
      %p120 = por %p118, %p119
      %p121 = scmp.ne.s32.totalorder %s113, %s115
      %p122 = scmp.eq.s32.totalorder %s21, 3
      %p123 = por %p121, %p122
      %p124 = scmp.ne.s32.totalorder %s115, %s116
      %p125 = scmp.eq.s32.totalorder %s21, 0
      %p126 = por %p124, %p125
      %p127 = scmp.ne.s32.totalorder %s115, %s116
      %p128 = scmp.eq.s32.totalorder %s22, 3
      %p129 = por %p127, %p128
      %p131 = scmp.ne.s32.totalorder %s116, %s130
      %p132 = scmp.eq.s32.totalorder %s22, 0
      %p133 = por %p131, %p132
      %s135 = sadd.s32 %s134, 1
      %p138 = scmp.eq.s32.totalorder %s16, 3
      %p139 = scmp.ne.s32.totalorder %s134, %s136
      %p140 = scmp.eq.s32.totalorder %s16, 0
      %p141 = por %p139, %p140
      %p142 = scmp.ne.s32.totalorder %s134, %s136
      %p143 = scmp.eq.s32.totalorder %s21, 3
      %p144 = por %p142, %p143
      %p145 = scmp.ne.s32.totalorder %s136, %s137
      %p146 = scmp.eq.s32.totalorder %s21, 0
      %p147 = por %p145, %p146
      %p148 = scmp.ne.s32.totalorder %s136, %s137
      %p149 = scmp.eq.s32.totalorder %s22, 3
      %p150 = por %p148, %p149
      %p152 = scmp.ne.s32.totalorder %s137, %s151
      %p153 = scmp.eq.s32.totalorder %s22, 0
      %p154 = por %p152, %p153
      %s156 = sadd.s32 %s155, 1
      %p159 = scmp.eq.s32.totalorder %s16, 3
      %p160 = scmp.ne.s32.totalorder %s155, %s157
      %p161 = scmp.eq.s32.totalorder %s16, 0
      %p162 = por %p160, %p161
      %p163 = scmp.ne.s32.totalorder %s155, %s157
      %p164 = scmp.eq.s32.totalorder %s21, 3
      %p165 = por %p163, %p164
      %p166 = scmp.ne.s32.totalorder %s157, %s158
      %p167 = scmp.eq.s32.totalorder %s21, 0
      %p168 = por %p166, %p167
      %p169 = scmp.ne.s32.totalorder %s157, %s158
      %p170 = scmp.eq.s32.totalorder %s22, 3
      %p171 = por %p169, %p170
      %p173 = scmp.ne.s32.totalorder %s158, %s172
      %p174 = scmp.eq.s32.totalorder %s22, 0
      %p175 = por %p173, %p174
      %s176 = ssub.s32 %s16, %s23
      %p177 = scmp.eq.s32.totalorder %s176, 0
      %s179 = sadd.s32 %s178, 1
      %s180 = scalar_select %p177, %s178, %s179
      %p183 = pneg %p177
      %p184 = scmp.eq.s32.totalorder %s16, 3
      %p185 = por %p183, %p184
      %p186 = scmp.ne.s32.totalorder %s178, %s181
      %p187 = scmp.eq.s32.totalorder %s16, 0
      %p188 = por %p186, %p187
      %p189 = scmp.ne.s32.totalorder %s178, %s181
      %p190 = scmp.eq.s32.totalorder %s21, 3
      %p191 = por %p189, %p190
      %p192 = scmp.ne.s32.totalorder %s181, %s182
      %p193 = scmp.eq.s32.totalorder %s21, 0
      %p194 = por %p192, %p193
      %p195 = scmp.ne.s32.totalorder %s181, %s182
      %p196 = scmp.eq.s32.totalorder %s22, 3
      %p197 = por %p195, %p196
      %p199 = scmp.ne.s32.totalorder %s182, %s198
      %p200 = scmp.eq.s32.totalorder %s22, 0
      %p201 = por %p199, %p200
      %p202 = scmp.le.s32.totalorder 1, %s16
      %p203 = scmp.lt.s32.totalorder %s16, 5
      %p204 = pnand %p202, %p203
      %p205 = pneg %p204
      // Predicated region
      $region9: #{gesture_classifier_forward.1} parent=5 // pred_check
        _
      $region10: #{gesture_classifier_forward.1} parent=5 // pred_check_branch
        %207 = sbr.rel (%p204) target = $region12
      $region11: #{gesture_classifier_forward.1} parent=5 // pred_region
        %s208 = ssub.s32 %s16, 1
        // Predicated region
        $region13: #{gesture_classifier_forward.1} parent=11 // pred_check
          %p209 = pneg %p63
        $region14: #{gesture_classifier_forward.1} parent=11 // pred_check_branch
          %211 = sbr.rel (%p209) target = $region16
        $region15: #{gesture_classifier_forward.1} parent=11 // pred_region
          _
        $region16: #{gesture_classifier_forward.1} parent=11 // pred_fallthru
          _
        // Predicated region
        $region17: #{gesture_classifier_forward.1} parent=11 // pred_check
          %p212 = pneg %p84
        $region18: #{gesture_classifier_forward.1} parent=11 // pred_check_branch
          %214 = sbr.rel (%p212) target = $region20
        $region19: #{gesture_classifier_forward.1} parent=11 // pred_region
          _
        $region20: #{gesture_classifier_forward.1} parent=11 // pred_fallthru
          _
        // Predicated region
        $region21: #{gesture_classifier_forward.1} parent=11 // pred_check
          %p215 = pneg %p105
        $region22: #{gesture_classifier_forward.1} parent=11 // pred_check_branch
          %217 = sbr.rel (%p215) target = $region24
        $region23: #{gesture_classifier_forward.1} parent=11 // pred_region
          _
        $region24: #{gesture_classifier_forward.1} parent=11 // pred_fallthru
          _
        // Predicated region
        $region25: #{gesture_classifier_forward.1} parent=11 // pred_check
          %p218 = pneg %p126
        $region26: #{gesture_classifier_forward.1} parent=11 // pred_check_branch
          %220 = sbr.rel (%p218) target = $region28
        $region27: #{gesture_classifier_forward.1} parent=11 // pred_region
          _
        $region28: #{gesture_classifier_forward.1} parent=11 // pred_fallthru
          _
        // Predicated region
        $region29: #{gesture_classifier_forward.1} parent=11 // pred_check
          %p221 = pneg %p147
        $region30: #{gesture_classifier_forward.1} parent=11 // pred_check_branch
          %223 = sbr.rel (%p221) target = $region32
        $region31: #{gesture_classifier_forward.1} parent=11 // pred_region
          _
        $region32: #{gesture_classifier_forward.1} parent=11 // pred_fallthru
          _
        // Predicated region
        $region33: #{gesture_classifier_forward.1} parent=11 // pred_check
          %p224 = pneg %p168
        $region34: #{gesture_classifier_forward.1} parent=11 // pred_check_branch
          %226 = sbr.rel (%p224) target = $region36
        $region35: #{gesture_classifier_forward.1} parent=11 // pred_region
          _
        $region36: #{gesture_classifier_forward.1} parent=11 // pred_fallthru
          _
      $region12: #{gesture_classifier_forward.1} parent=5 // pred_fallthru
        _
      %p227 = scmp.lt.s32.totalorder %s16, 4
      // Predicated region
      $region37: #{gesture_classifier_forward.1} parent=5 // pred_check
        %p228 = pneg %p227
      $region38: #{gesture_classifier_forward.1} parent=5 // pred_check_branch
        %230 = sbr.rel (%p228) target = $region40
      $region39: #{gesture_classifier_forward.1} parent=5 // pred_region
        // Predicated region
        $region41: #{gesture_classifier_forward.1} parent=39 // pred_check
          %p231 = pneg %p36
        $region42: #{gesture_classifier_forward.1} parent=39 // pred_check_branch
          %233 = sbr.rel (%p231) target = $region44
        $region43: #{gesture_classifier_forward.1} parent=39 // pred_region
          %s234 = sand.u32 %s26, 1
          %s235 = scalar_lea.sflag [#allocation3], %s234
          %s236 = sand.u32 %s26, 1
          %s237 = smul.addr %s236, 128
          %s238 = scalar_lea.vmem [#allocation2], %s237
          %s239 = smul.u32 8, %s16
          %s240 = ssub.s32 25, %s239
          %p241 = scmp.lt.s32.totalorder %s240, 8
          %s242 = scalar_select %p241, %s240, 8
          %s243 = smul.u32 128, %s242
          %s244 = smul.u32 %s243, 2
          %s246 = ssub.s32 2048, %s244
          %247 = vsyncadd %s235, %s246
          %p248 = scmp.ne.s32.totalorder 0, %s244
          %s249 = smul.addr %s239, 2
          %s250 = smul.addr %s249, 128
          %s251 = scalar_lea.hbm %s0, %s250
          %s252 = smul.u32 16, %s242
          %s253 = sshll.u32 %s238, 4
          %s254 = int_to_ptr.vmem [resolvable:$true] %s253
          %s255 = sshll.u32 %s252, 4
          %259 = dma.hbm_to_vmem [thread:$0]  (%p248), %s251, %s255, %s254, %s235, 256, 256, 16
        $region44: #{gesture_classifier_forward.1} parent=39 // pred_fallthru
          _
      $region40: #{gesture_classifier_forward.1} parent=5 // pred_fallthru
        _
      %p260 = scmp.le.s32.totalorder 1, %s16
      %p261 = scmp.lt.s32.totalorder %s16, 5
      %p262 = pnand %p260, %p261
      %p263 = pneg %p262
      // Predicated region
      $region45: #{gesture_classifier_forward.1} parent=5 // pred_check
        _
      $region46: #{gesture_classifier_forward.1} parent=5 // pred_check_branch
        %265 = sbr.rel (%p262) target = $region48
      $region47: #{gesture_classifier_forward.1} parent=5 // pred_region
        %s266 = ssub.s32 %s16, 1
        %s267 = sand.u32 %s29, 1
        %s268 = scalar_lea.sflag [#allocation3], %s267
        %s269 = sand.u32 %s29, 1
        %s270 = smul.addr %s269, 128
        %s271 = scalar_lea.vmem [#allocation2], %s270
        // Predicated region
        $region49: #{gesture_classifier_forward.1} parent=47 // pred_check
          %p272 = pneg %p42
        $region50: #{gesture_classifier_forward.1} parent=47 // pred_check_branch
          %274 = sbr.rel (%p272) target = $region52
        $region51: #{gesture_classifier_forward.1} parent=47 // pred_region
          %275 = dma.done %s268, 2048
        $region52: #{gesture_classifier_forward.1} parent=47 // pred_fallthru
          _
        %s276 = sand.u32 %s29, 1
        %s277 = scalar_lea.sflag [#allocation3], %s276
        %s278 = sand.u32 %s29, 1
        %s279 = smul.addr %s278, 128
        %s280 = scalar_lea.vmem [#allocation2], %s279
        %p281 = pneg %p42
        %p282 = pneg %p39
        %p283 = pneg %p63
        %p284 = pneg %p60
        %p285 = pneg %p84
        %p286 = pneg %p81
        %p287 = pneg %p105
        %p288 = pneg %p102
        %p289 = pneg %p126
        %p290 = pneg %p123
        %p291 = pneg %p147
        %p292 = pneg %p144
        %p293 = pneg %p168
        %p294 = pneg %p165
        %p295 = pneg %p194
        %p296 = pneg %p191
        %s297 = sand.u32 %s181, 1
        %s298 = sand.u32 %s181, 1
        %s299 = smul.addr %s298, 64
        %s300 = scalar_lea.vmem [#allocation4], %s299
        %s301 = smul.u32 8, %s21
        %s302 = ssub.s32 25, %s301
        %p303 = scmp.lt.s32.totalorder %s302, 8
        %s304 = scalar_select %p303, %s302, 8
        %s305 = smul.u32 128, %s304
        %s306 = smul.u32 %s305, 2
        %s307 = smul.u32 8, %s21
        %s308 = ssub.s32 25, %s307
        %p309 = scmp.lt.s32.totalorder %s308, 8
        %s310 = scalar_select %p309, %s308, 8
        %s311 = smul.u32 128, %s310
        %v313 = vld [vmem:[%s271] sm:$0xff]
        %v314 = vld [vmem:[%s271 + $0x8] sm:$0xff]
        %v315 = vld [vmem:[%s271 + $0x10] sm:$0xff]
        %v316 = vld [vmem:[%s271 + $0x18] sm:$0xff]
        %v317 = vld [vmem:[%s271 + $0x20] sm:$0xff]
        %v318 = vld [vmem:[%s271 + $0x28] sm:$0xff]
        %v319 = vld [vmem:[%s271 + $0x30] sm:$0xff]
        %v320 = vld [vmem:[%s271 + $0x38] sm:$0xff]
        %v321 = vld [vmem:[%s271 + $0x40] sm:$0xff]
        %v322 = vld [vmem:[%s271 + $0x48] sm:$0xff]
        %v323 = vld [vmem:[%s271 + $0x50] sm:$0xff]
        %v324 = vld [vmem:[%s271 + $0x58] sm:$0xff]
        %v325 = vld [vmem:[%s271 + $0x60] sm:$0xff]
        %v326 = vld [vmem:[%s271 + $0x68] sm:$0xff]
        %v327 = vld [vmem:[%s271 + $0x70] sm:$0xff]
        %v328 = vld [vmem:[%s271 + $0x78] sm:$0xff]
        %v329 = vpack.c.bf16 %v315, %v313
        %v330 = vpack.c.bf16 %v316, %v314
        %v331 = vpack.c.bf16 %v319, %v317
        %v332 = vpack.c.bf16 %v320, %v318
        %v333 = vpack.c.bf16 %v323, %v321
        %v334 = vpack.c.bf16 %v324, %v322
        %v335 = vpack.c.bf16 %v327, %v325
        %v336 = vpack.c.bf16 %v328, %v326
        %v337 = vld [vmem:[%s1] sm:$0xf]
        %v338 = vld [vmem:[%s1 + $0x4] sm:$0xf]
        %v339 = vld [vmem:[%s1 + $0x8] sm:$0xf]
        %v340 = vld [vmem:[%s1 + $0xc] sm:$0xf]
        %v341 = vld [vmem:[%s1 + $0x10] sm:$0xf]
        %v342 = vld [vmem:[%s1 + $0x14] sm:$0xf]
        %v343 = vld [vmem:[%s1 + $0x18] sm:$0xf]
        %v344 = vld [vmem:[%s1 + $0x1c] sm:$0xf]
        %v345 = vld [vmem:[%s1 + $0x20] sm:$0xf]
        %v346 = vld [vmem:[%s1 + $0x24] sm:$0xf]
        %v347 = vld [vmem:[%s1 + $0x28] sm:$0xf]
        %v348 = vld [vmem:[%s1 + $0x2c] sm:$0xf]
        %v349 = vld [vmem:[%s1 + $0x30] sm:$0xf]
        %v350 = vld [vmem:[%s1 + $0x34] sm:$0xf]
        %v351 = vld [vmem:[%s1 + $0x38] sm:$0xf]
        %v352 = vld [vmem:[%s1 + $0x3c] sm:$0xf]
        %v353 = vld [vmem:[%s1 + $0x40] sm:$0xf]
        %v354 = vld [vmem:[%s1 + $0x44] sm:$0xf]
        %v355 = vld [vmem:[%s1 + $0x48] sm:$0xf]
        %v356 = vld [vmem:[%s1 + $0x4c] sm:$0xf]
        %v357 = vld [vmem:[%s1 + $0x50] sm:$0xf]
        %v358 = vld [vmem:[%s1 + $0x54] sm:$0xf]
        %v359 = vld [vmem:[%s1 + $0x58] sm:$0xf]
        %v360 = vld [vmem:[%s1 + $0x5c] sm:$0xf]
        %v361 = vld [vmem:[%s1 + $0x60] sm:$0xf]
        %v362 = vld [vmem:[%s1 + $0x64] sm:$0xf]
        %v363 = vld [vmem:[%s1 + $0x68] sm:$0xf]
        %v364 = vld [vmem:[%s1 + $0x6c] sm:$0xf]
        %v365 = vld [vmem:[%s1 + $0x70] sm:$0xf]
        %v366 = vld [vmem:[%s1 + $0x74] sm:$0xf]
        %v367 = vld [vmem:[%s1 + $0x78] sm:$0xf]
        %v368 = vld [vmem:[%s1 + $0x7c] sm:$0xf]
        %v369 = vld [vmem:[%s2] sm:$0x1]
        %v371 = vlaneseq
        %v372 = vshrl.u32 %v371, 7
        %v373 = vsub.s32 0, %v372
        %v374 = vrot.slane %v369, %v373
        %v408 = vunpack.c.l.b16 %v337
        %v409 = vunpack.c.l.b16 %v338
        %v410 = vunpack.c.l.b16 %v339
        %v411 = vunpack.c.l.b16 %v340
        %v412 = vunpack.c.l.b16 %v341
        %v413 = vunpack.c.l.b16 %v342
        %v414 = vunpack.c.l.b16 %v343
        %v415 = vunpack.c.l.b16 %v344
        %v416 = vunpack.c.l.b16 %v345
        %v417 = vunpack.c.l.b16 %v346
        %v418 = vunpack.c.l.b16 %v347
        %v419 = vunpack.c.l.b16 %v348
        %v420 = vunpack.c.l.b16 %v349
        %v421 = vunpack.c.l.b16 %v350
        %v422 = vunpack.c.l.b16 %v351
        %v423 = vunpack.c.l.b16 %v352
        %v424 = vunpack.c.l.b16 %v353
        %v425 = vunpack.c.l.b16 %v354
        %v426 = vunpack.c.l.b16 %v355
        %v427 = vunpack.c.l.b16 %v356
        %v428 = vunpack.c.l.b16 %v357
        %v429 = vunpack.c.l.b16 %v358
        %v430 = vunpack.c.l.b16 %v359
        %v431 = vunpack.c.l.b16 %v360
        %v432 = vunpack.c.l.b16 %v361
        %v433 = vunpack.c.l.b16 %v362
        %v434 = vunpack.c.l.b16 %v363
        %v435 = vunpack.c.l.b16 %v364
        %v436 = vunpack.c.l.b16 %v365
        %v437 = vunpack.c.l.b16 %v366
        %v438 = vunpack.c.l.b16 %v367
        %v439 = vunpack.c.l.b16 %v368
        %v440 = vpack.c.b16 %v409, %v408
        %v441 = vpack.c.b16 %v411, %v410
        %v442 = vpack.c.b16 %v413, %v412
        %v443 = vpack.c.b16 %v415, %v414
        %v444 = vpack.c.b16 %v417, %v416
        %v445 = vpack.c.b16 %v419, %v418
        %v446 = vpack.c.b16 %v421, %v420
        %v447 = vpack.c.b16 %v423, %v422
        %v448 = vpack.c.b16 %v425, %v424
        %v449 = vpack.c.b16 %v427, %v426
        %v450 = vpack.c.b16 %v429, %v428
        %v451 = vpack.c.b16 %v431, %v430
        %v452 = vpack.c.b16 %v433, %v432
        %v453 = vpack.c.b16 %v435, %v434
        %v454 = vpack.c.b16 %v437, %v436
        %v455 = vpack.c.b16 %v439, %v438
        %472 = vmatprep.subr.bf16.mxu0 0
        %473 = vmatpush1.bf16.msra.mxu0 %v440
        %474 = vmatprep.subr.bf16.mxu0 0
        %475 = vmatpush1.bf16.msra.mxu0 %v441
        %476 = vmatprep.subr.bf16.mxu0 0
        %477 = vmatpush1.bf16.msra.mxu0 %v442
        %478 = vmatprep.subr.bf16.mxu0 0
        %479 = vmatpush1.bf16.msra.mxu0 %v443
        %480 = vmatprep.subr.bf16.mxu0 0
        %481 = vmatpush1.bf16.msra.mxu0 %v444
        %482 = vmatprep.subr.bf16.mxu0 0
        %483 = vmatpush1.bf16.msra.mxu0 %v445
        %484 = vmatprep.subr.bf16.mxu0 0
        %485 = vmatpush1.bf16.msra.mxu0 %v446
        %486 = vmatprep.subr.bf16.mxu0 0
        %487 = vmatpush1.bf16.msra.mxu0 %v447
        %488 = vmatprep.subr.bf16.mxu0 0
        %489 = vmatpush1.bf16.msra.mxu0 %v448
        %490 = vmatprep.subr.bf16.mxu0 0
        %491 = vmatpush1.bf16.msra.mxu0 %v449
        %492 = vmatprep.subr.bf16.mxu0 0
        %493 = vmatpush1.bf16.msra.mxu0 %v450
        %494 = vmatprep.subr.bf16.mxu0 0
        %495 = vmatpush1.bf16.msra.mxu0 %v451
        %496 = vmatprep.subr.bf16.mxu0 0
        %497 = vmatpush1.bf16.msra.mxu0 %v452
        %498 = vmatprep.subr.bf16.mxu0 0
        %499 = vmatpush1.bf16.msra.mxu0 %v453
        %500 = vmatprep.subr.bf16.mxu0 0
        %501 = vmatpush1.bf16.msra.mxu0 %v454
        %502 = vmatprep.subr.bf16.mxu0 0
        %503 = vmatpush1.bf16.msra.mxu0 %v455
        %504 = vmatprep.mubr.bf16.mxu0 %v330
        %505 = vmatmul.mubr.bf16.gmra.mrb[0].mxu0 %v329
        %v506 = vpop.f32.mrb[0].mxu0
        %v507 = vadd.f32 %v374, %v506
        %v508 = vpop.f32.mrb[0].mxu0
        %v509 = vpop.f32.mrb[0].mxu0
        %v510 = vadd.f32 %v374, %v509
        %v511 = vpop.f32.mrb[0].mxu0
        %512 = vmatprep.mubr.bf16.mxu0 %v332
        %513 = vmatmul.mubr.bf16.gmra.mrb[0].mxu0 %v331
        %v514 = vpop.f32.mrb[0].mxu0
        %v515 = vadd.f32 %v374, %v514
        %v516 = vpop.f32.mrb[0].mxu0
        %v517 = vpop.f32.mrb[0].mxu0
        %v518 = vadd.f32 %v374, %v517
        %v519 = vpop.f32.mrb[0].mxu0
        %520 = vmatprep.mubr.bf16.mxu0 %v334
        %521 = vmatmul.mubr.bf16.gmra.mrb[0].mxu0 %v333
        %v522 = vpop.f32.mrb[0].mxu0
        %v523 = vadd.f32 %v374, %v522
        %v524 = vpop.f32.mrb[0].mxu0
        %v525 = vpop.f32.mrb[0].mxu0
        %v526 = vadd.f32 %v374, %v525
        %v527 = vpop.f32.mrb[0].mxu0
        %528 = vmatprep.mubr.bf16.mxu0 %v336
        %529 = vmatmul.mubr.bf16.gmra.mrb[0].mxu0 %v335
        %v530 = vpop.f32.mrb[0].mxu0
        %v531 = vadd.f32 %v374, %v530
        %v532 = vpop.f32.mrb[0].mxu0
        %v533 = vpop.f32.mrb[0].mxu0
        %v534 = vadd.f32 %v374, %v533
        %v535 = vpop.f32.mrb[0].mxu0
        %536 = vdwg.mxu0
        %v537 = vmax.f32 %v507, 0.0
        %v538 = vmax.f32 %v510, 0.0
        %v539 = vmax.f32 %v515, 0.0
        %v540 = vmax.f32 %v518, 0.0
        %v541 = vmax.f32 %v523, 0.0
        %v542 = vmax.f32 %v526, 0.0
        %v543 = vmax.f32 %v531, 0.0
        %v544 = vmax.f32 %v534, 0.0
        %v545 = vpack.c.bf16 %v538, %v537
        %v546 = vpack.c.bf16 %v540, %v539
        %v547 = vpack.c.bf16 %v542, %v541
        %v548 = vpack.c.bf16 %v544, %v543
        %v549 = vld [vmem:[%s3] sm:$0xf]
        %v550 = vld [vmem:[%s3 + $0x4] sm:$0xf]
        %v551 = vld [vmem:[%s3 + $0x8] sm:$0xf]
        %v552 = vld [vmem:[%s3 + $0xc] sm:$0xf]
        %v553 = vld [vmem:[%s3 + $0x10] sm:$0xf]
        %v554 = vld [vmem:[%s3 + $0x14] sm:$0xf]
        %v555 = vld [vmem:[%s3 + $0x18] sm:$0xf]
        %v556 = vld [vmem:[%s3 + $0x1c] sm:$0xf]
        %v557 = vld [vmem:[%s4] sm:$0x1]
        %v559 = vlaneseq
        %v560 = vshrl.u32 %v559, 7
        %v561 = vsub.s32 0, %v560
        %v562 = vrot.slane %v557, %v561
        %v572 = vunpack.c.l.b16 %v549
        %v573 = vunpack.c.l.b16 %v550
        %v574 = vunpack.c.l.b16 %v551
        %v575 = vunpack.c.l.b16 %v552
        %v576 = vunpack.c.l.b16 %v553
        %v577 = vunpack.c.l.b16 %v554
        %v578 = vunpack.c.l.b16 %v555
        %v579 = vunpack.c.l.b16 %v556
        %v580 = vpack.c.b16 %v573, %v572
        %v581 = vpack.c.b16 %v575, %v574
        %v582 = vpack.c.b16 %v577, %v576
        %v583 = vpack.c.b16 %v579, %v578
        %vm588 = vcmask 523264
        %v590 = vsel %vm588, %v545, 0
        %v593 = vsel %vm588, %v546, 0
        %v596 = vsel %vm588, %v547, 0
        %v599 = vsel %vm588, %v548, 0
        %601 = vmatprep.subr.bf16.mxu0 0
        %602 = vmatpush1.bf16.msra.mxu0 %v580
        %603 = vmatprep.subr.bf16.mxu0 0
        %604 = vmatpush1.bf16.msra.mxu0 %v581
        %605 = vmatprep.subr.bf16.mxu0 0
        %606 = vmatpush1.bf16.msra.mxu0 %v582
        %607 = vmatprep.subr.bf16.mxu0 0
        %608 = vmatpush1.bf16.msra.mxu0 %v583
        %609 = vmatprep.subr.bf16.mxu0 0
        %610 = vmatpush1.bf16.msra.mxu0 0
        %611 = vmatprep.subr.bf16.mxu0 0
        %612 = vmatpush1.bf16.msra.mxu0 0
        %613 = vmatprep.subr.bf16.mxu0 0
        %614 = vmatpush1.bf16.msra.mxu0 0
        %615 = vmatprep.subr.bf16.mxu0 0
        %616 = vmatpush1.bf16.msra.mxu0 0
        %617 = vmatprep.subr.bf16.mxu0 0
        %618 = vmatpush1.bf16.msra.mxu0 0
        %619 = vmatprep.subr.bf16.mxu0 0
        %620 = vmatpush1.bf16.msra.mxu0 0
        %621 = vmatprep.subr.bf16.mxu0 0
        %622 = vmatpush1.bf16.msra.mxu0 0
        %623 = vmatprep.subr.bf16.mxu0 0
        %624 = vmatpush1.bf16.msra.mxu0 0
        %625 = vmatprep.subr.bf16.mxu0 0
        %626 = vmatpush1.bf16.msra.mxu0 0
        %627 = vmatprep.subr.bf16.mxu0 0
        %628 = vmatpush1.bf16.msra.mxu0 0
        %629 = vmatprep.subr.bf16.mxu0 0
        %630 = vmatpush1.bf16.msra.mxu0 0
        %631 = vmatprep.subr.bf16.mxu0 0
        %632 = vmatpush1.bf16.msra.mxu0 0
        %633 = vmatprep.mubr.bf16.mxu0 0
        %634 = vmatmul.mubr.bf16.gmra.mrb[0].mxu0 %v590
        %v635 = vpop.f32.mrb[0].mxu0
        %v636 = vadd.f32 %v562, %v635
        %v637 = vpop.f32.mrb[0].mxu0
        %v638 = vpop.f32.mrb[0].mxu0
        %v639 = vadd.f32 %v562, %v638
        %v640 = vpop.f32.mrb[0].mxu0
        %641 = vmatprep.mubr.bf16.mxu0 0
        %642 = vmatmul.mubr.bf16.gmra.mrb[0].mxu0 %v593
        %v643 = vpop.f32.mrb[0].mxu0
        %v644 = vadd.f32 %v562, %v643
        %v645 = vpop.f32.mrb[0].mxu0
        %v646 = vpop.f32.mrb[0].mxu0
        %v647 = vadd.f32 %v562, %v646
        %v648 = vpop.f32.mrb[0].mxu0
        %649 = vmatprep.mubr.bf16.mxu0 0
        %650 = vmatmul.mubr.bf16.gmra.mrb[0].mxu0 %v596
        %v651 = vpop.f32.mrb[0].mxu0
        %v652 = vadd.f32 %v562, %v651
        %v653 = vpop.f32.mrb[0].mxu0
        %v654 = vpop.f32.mrb[0].mxu0
        %v655 = vadd.f32 %v562, %v654
        %v656 = vpop.f32.mrb[0].mxu0
        %657 = vmatprep.mubr.bf16.mxu0 0
        %658 = vmatmul.mubr.bf16.gmra.mrb[0].mxu0 %v599
        %v659 = vpop.f32.mrb[0].mxu0
        %v660 = vadd.f32 %v562, %v659
        %v661 = vpop.f32.mrb[0].mxu0
        %v662 = vpop.f32.mrb[0].mxu0
        %v663 = vadd.f32 %v562, %v662
        %v664 = vpop.f32.mrb[0].mxu0
        %665 = vdwg.mxu0
        %v666 = vmax.f32 %v636, 0.0
        %v667 = vmax.f32 %v639, 0.0
        %v668 = vmax.f32 %v644, 0.0
        %v669 = vmax.f32 %v647, 0.0
        %v670 = vmax.f32 %v652, 0.0
        %v671 = vmax.f32 %v655, 0.0
        %v672 = vmax.f32 %v660, 0.0
        %v673 = vmax.f32 %v663, 0.0
        %v674 = vpack.c.bf16 %v667, %v666
        %v675 = vpack.c.bf16 %v669, %v668
        %v676 = vpack.c.bf16 %v671, %v670
        %v677 = vpack.c.bf16 %v673, %v672
        %v678 = vld [vmem:[%s5] sm:$0xf]
        %v679 = vld [vmem:[%s5 + $0x4] sm:$0xf]
        %v680 = vld [vmem:[%s5 + $0x8] sm:$0xf]
        %v681 = vld [vmem:[%s5 + $0xc] sm:$0xf]
        %v682 = vld [vmem:[%s6] sm:$0x1]
        %v684 = vlaneseq
        %v685 = vshrl.u32 %v684, 7
        %v686 = vsub.s32 0, %v685
        %v687 = vrot.slane %v682, %v686
        %v693 = vunpack.c.l.b16 %v678
        %v694 = vunpack.c.l.b16 %v679
        %v695 = vunpack.c.l.b16 %v680
        %v696 = vunpack.c.l.b16 %v681
        %v697 = vpack.c.b16 %v694, %v693
        %v698 = vpack.c.b16 %v696, %v695
        %vm701 = vcmask 261120
        %v703 = vsel %vm701, %v674, 0
        %v706 = vsel %vm701, %v675, 0
        %v709 = vsel %vm701, %v676, 0
        %v712 = vsel %vm701, %v677, 0
        %714 = vmatprep.subr.bf16.mxu0 0
        %715 = vmatpush1.bf16.msra.mxu0 %v697
        %716 = vmatprep.subr.bf16.mxu0 0
        %717 = vmatpush1.bf16.msra.mxu0 %v698
        %718 = vmatprep.subr.bf16.mxu0 0
        %719 = vmatpush1.bf16.msra.mxu0 0
        %720 = vmatprep.subr.bf16.mxu0 0
        %721 = vmatpush1.bf16.msra.mxu0 0
        %722 = vmatprep.subr.bf16.mxu0 0
        %723 = vmatpush1.bf16.msra.mxu0 0
        %724 = vmatprep.subr.bf16.mxu0 0
        %725 = vmatpush1.bf16.msra.mxu0 0
        %726 = vmatprep.subr.bf16.mxu0 0
        %727 = vmatpush1.bf16.msra.mxu0 0
        %728 = vmatprep.subr.bf16.mxu0 0
        %729 = vmatpush1.bf16.msra.mxu0 0
        %730 = vmatprep.subr.bf16.mxu0 0
        %731 = vmatpush1.bf16.msra.mxu0 0
        %732 = vmatprep.subr.bf16.mxu0 0
        %733 = vmatpush1.bf16.msra.mxu0 0
        %734 = vmatprep.subr.bf16.mxu0 0
        %735 = vmatpush1.bf16.msra.mxu0 0
        %736 = vmatprep.subr.bf16.mxu0 0
        %737 = vmatpush1.bf16.msra.mxu0 0
        %738 = vmatprep.subr.bf16.mxu0 0
        %739 = vmatpush1.bf16.msra.mxu0 0
        %740 = vmatprep.subr.bf16.mxu0 0
        %741 = vmatpush1.bf16.msra.mxu0 0
        %742 = vmatprep.subr.bf16.mxu0 0
        %743 = vmatpush1.bf16.msra.mxu0 0
        %744 = vmatprep.subr.bf16.mxu0 0
        %745 = vmatpush1.bf16.msra.mxu0 0
        %746 = vmatprep.mubr.bf16.mxu0 0
        %747 = vmatmul.mubr.bf16.gmra.mrb[0].mxu0 %v703
        %v748 = vpop.f32.mrb[0].mxu0
        %v749 = vadd.f32 %v687, %v748
        %v750 = vpop.f32.mrb[0].mxu0
        %v751 = vpop.f32.mrb[0].mxu0
        %v752 = vadd.f32 %v687, %v751
        %v753 = vpop.f32.mrb[0].mxu0
        %754 = vmatprep.mubr.bf16.mxu0 0
        %755 = vmatmul.mubr.bf16.gmra.mrb[0].mxu0 %v706
        %v756 = vpop.f32.mrb[0].mxu0
        %v757 = vadd.f32 %v687, %v756
        %v758 = vpop.f32.mrb[0].mxu0
        %v759 = vpop.f32.mrb[0].mxu0
        %v760 = vadd.f32 %v687, %v759
        %v761 = vpop.f32.mrb[0].mxu0
        %762 = vmatprep.mubr.bf16.mxu0 0
        %763 = vmatmul.mubr.bf16.gmra.mrb[0].mxu0 %v709
        %v764 = vpop.f32.mrb[0].mxu0
        %v765 = vadd.f32 %v687, %v764
        %v766 = vpop.f32.mrb[0].mxu0
        %v767 = vpop.f32.mrb[0].mxu0
        %v768 = vadd.f32 %v687, %v767
        %v769 = vpop.f32.mrb[0].mxu0
        %770 = vmatprep.mubr.bf16.mxu0 0
        %771 = vmatmul.mubr.bf16.gmra.mrb[0].mxu0 %v712
        %v772 = vpop.f32.mrb[0].mxu0
        %v773 = vadd.f32 %v687, %v772
        %v774 = vpop.f32.mrb[0].mxu0
        %v775 = vpop.f32.mrb[0].mxu0
        %v776 = vadd.f32 %v687, %v775
        %v777 = vpop.f32.mrb[0].mxu0
        %778 = vdwg.mxu0
        %vm779 = vcmask 80896
        %780 = vst.msk [vmem:[%s300] sm:$0xff] %vm779, %v749
        %781 = vst.msk [vmem:[%s300 + $0x8] sm:$0xff] %vm779, %v752
        %782 = vst.msk [vmem:[%s300 + $0x10] sm:$0xff] %vm779, %v757
        %783 = vst.msk [vmem:[%s300 + $0x18] sm:$0xff] %vm779, %v760
        %784 = vst.msk [vmem:[%s300 + $0x20] sm:$0xff] %vm779, %v765
        %785 = vst.msk [vmem:[%s300 + $0x28] sm:$0xff] %vm779, %v768
        %786 = vst.msk [vmem:[%s300 + $0x30] sm:$0xff] %vm779, %v773
        %787 = vst.msk [vmem:[%s300 + $0x38] sm:$0xff] %vm779, %v776
        %s788 = sand.u32 %s181, 1
        %s789 = sand.u32 %s181, 1
        %s790 = smul.addr %s789, 64
        %s791 = scalar_lea.vmem [#allocation4], %s790
        // Predicated region
        $region53: #{gesture_classifier_forward.1} parent=47 // pred_check
          %p792 = pneg %p191
        $region54: #{gesture_classifier_forward.1} parent=47 // pred_check_branch
          %794 = sbr.rel (%p792) target = $region56
        $region55: #{gesture_classifier_forward.1} parent=47 // pred_region
          %s795 = smul.u32 8, %s21
          %s796 = ssub.s32 25, %s795
          %p797 = scmp.lt.s32.totalorder %s796, 8
          %s798 = scalar_select %p797, %s796, 8
          %s799 = smul.u32 128, %s798
          %p800 = scmp.ne.s32.totalorder 0, %s799
          %s801 = smul.addr %s795, 8
          %s802 = scalar_lea.vmem %s7, %s801
          // Predicated region
          $region57: #{gesture_classifier_forward.1} parent=55 // pred_check
            %p803 = pneg %p800
          $region58: #{gesture_classifier_forward.1} parent=55 // pred_check_branch
            %805 = sbr.rel (%p803) target = $region60
          $region59: #{gesture_classifier_forward.1} parent=55 // pred_region
            // Predicated region
            $region61: #{gesture_classifier_forward.1} parent=59 // pred_check
              _
            $region62: #{gesture_classifier_forward.1} parent=59 // pred_check_branch
              %807 = sbr.rel (0) target = $region64
            $region63: #{gesture_classifier_forward.1} parent=59 // pred_region
              // Predicated region
              $region83: #{gesture_classifier_forward.1} parent=63 // pred_check
                _
              $region84: #{gesture_classifier_forward.1} parent=63 // pred_check_branch
                %870 = sbr.rel (0) target = $region86
              $region85: #{gesture_classifier_forward.1} parent=63 // pred_region
                %s871 = sshrl.u32 %s798, 3
                // While loop
                $region87: #{gesture_classifier_forward.1} parent=85 // loop_pre_header
                  _
                $region88: #{gesture_classifier_forward.1} parent=85 // loop_header
                  %s873 = sphi 0, %s875
                  %p874 = scmp.ge.s32.totalorder %s873, %s871
                  %s878 = sphi 0, %s899
                  %s879 = sphi %s791, %s902
                  %s880 = sphi %s802, %s903
                $region89: #{gesture_classifier_forward.1} parent=85 // loop_header_branch
                  %877 = sbr.rel (%p874) target = $region93
                $region90: #{gesture_classifier_forward.1} parent=85 // loop_body
                  %v881 = vld [vmem:[%s879] sm:$0xff]
                  %882 = vst [vmem:[%s880] sm:$0xff] %v881
                  %v883 = vld [vmem:[%s879 + $0x8] sm:$0xff]
                  %884 = vst [vmem:[%s880 + $0x8] sm:$0xff] %v883
                  %v885 = vld [vmem:[%s879 + $0x10] sm:$0xff]
                  %886 = vst [vmem:[%s880 + $0x10] sm:$0xff] %v885
                  %v887 = vld [vmem:[%s879 + $0x18] sm:$0xff]
                  %888 = vst [vmem:[%s880 + $0x18] sm:$0xff] %v887
                  %v889 = vld [vmem:[%s879 + $0x20] sm:$0xff]
                  %890 = vst [vmem:[%s880 + $0x20] sm:$0xff] %v889
                  %v891 = vld [vmem:[%s879 + $0x28] sm:$0xff]
                  %892 = vst [vmem:[%s880 + $0x28] sm:$0xff] %v891
                  %v893 = vld [vmem:[%s879 + $0x30] sm:$0xff]
                  %894 = vst [vmem:[%s880 + $0x30] sm:$0xff] %v893
                  %v895 = vld [vmem:[%s879 + $0x38] sm:$0xff]
                  %896 = vst [vmem:[%s880 + $0x38] sm:$0xff] %v895
                  %s897 = sadd.s32 1, %s878
                  %p898 = scmp.ge.s32.totalorder %s897, %s871
                  %s899 = scalar_select %p898, 0, %s897
                  %s900 = smul.u32 %s899, 64
                  %s901 = smul.u32 %s899, 64
                  %s902 = scalar_lea.vmem %s791, %s900 [#allocation4]
                  %s903 = scalar_lea.vmem %s802, %s901
                $region91: #{gesture_classifier_forward.1} parent=85 // loop_footer
                  %s875 = sadd.s32 %s873, 1
                $region92: #{gesture_classifier_forward.1} parent=85 // loop_footer_branch
                  %872 = sbr.rel target = $region88
                $region93: #{gesture_classifier_forward.1} parent=85 // loop_exit
                  _
                %s904 = sshrl.u32 %s798, 3
                %s905 = sand.u32 %s798, 7
                %s906 = smul.u32 %s904, 8
                %s907 = smul.u32 8, %s906
                %s908 = scalar_lea.vmem %s791, %s907 [#allocation4]
                %s909 = smul.u32 8, %s906
                %s910 = scalar_lea.vmem %s802, %s909
                // While loop
                $region94: #{gesture_classifier_forward.1} parent=85 // loop_pre_header
                  _
                $region95: #{gesture_classifier_forward.1} parent=85 // loop_header
                  %s912 = sphi 0, %s914
                  %p913 = scmp.ge.s32.totalorder %s912, %s905
                  %s917 = sphi 0, %s924
                  %s918 = sphi %s908, %s927
                  %s919 = sphi %s910, %s928
                $region96: #{gesture_classifier_forward.1} parent=85 // loop_header_branch
                  %916 = sbr.rel (%p913) target = $region100
                $region97: #{gesture_classifier_forward.1} parent=85 // loop_body
                  %v920 = vld [vmem:[%s918] sm:$0xff]
                  %921 = vst [vmem:[%s919] sm:$0xff] %v920
                  %s922 = sadd.s32 1, %s917
                  %p923 = scmp.ge.s32.totalorder %s922, %s905
                  %s924 = scalar_select %p923, 0, %s922
                  %s925 = smul.u32 %s924, 8
                  %s926 = smul.u32 %s924, 8
                  %s927 = scalar_lea.vmem %s908, %s925 [#allocation4]
                  %s928 = scalar_lea.vmem %s910, %s926
                $region98: #{gesture_classifier_forward.1} parent=85 // loop_footer
                  %s914 = sadd.s32 %s912, 1
                $region99: #{gesture_classifier_forward.1} parent=85 // loop_footer_branch
                  %911 = sbr.rel target = $region95
                $region100: #{gesture_classifier_forward.1} parent=85 // loop_exit
                  _
              $region86: #{gesture_classifier_forward.1} parent=63 // pred_fallthru
                _
              // Predicated region
              $region101: #{gesture_classifier_forward.1} parent=63 // pred_check
                _
              $region102: #{gesture_classifier_forward.1} parent=63 // pred_check_branch
                %930 = sbr.rel target = $region104
              $region103: #{gesture_classifier_forward.1} parent=63 // pred_region
                _
              $region104: #{gesture_classifier_forward.1} parent=63 // pred_fallthru
                _
            $region64: #{gesture_classifier_forward.1} parent=59 // pred_fallthru
              _
            // Predicated region
            $region65: #{gesture_classifier_forward.1} parent=59 // pred_check
              _
            $region66: #{gesture_classifier_forward.1} parent=59 // pred_check_branch
              %809 = sbr.rel target = $region68
            $region67: #{gesture_classifier_forward.1} parent=59 // pred_region
              %s811 = sshrl.u32 %s798, 3
              // While loop
              $region69: #{gesture_classifier_forward.1} parent=67 // loop_pre_header
                _
              $region70: #{gesture_classifier_forward.1} parent=67 // loop_header
                %s813 = sphi 0, %s815
                %p814 = scmp.ge.s32.totalorder %s813, %s811
                %s818 = sphi 0, %s839
                %s819 = sphi %s791, %s842
                %s820 = sphi %s802, %s843
              $region71: #{gesture_classifier_forward.1} parent=67 // loop_header_branch
                %817 = sbr.rel (%p814) target = $region75
              $region72: #{gesture_classifier_forward.1} parent=67 // loop_body
                %v821 = vld [vmem:[%s819] sm:$0xff]
                %822 = vst [vmem:[%s820] sm:$0xff] %v821
                %v823 = vld [vmem:[%s819 + $0x8] sm:$0xff]
                %824 = vst [vmem:[%s820 + $0x8] sm:$0xff] %v823
                %v825 = vld [vmem:[%s819 + $0x10] sm:$0xff]
                %826 = vst [vmem:[%s820 + $0x10] sm:$0xff] %v825
                %v827 = vld [vmem:[%s819 + $0x18] sm:$0xff]
                %828 = vst [vmem:[%s820 + $0x18] sm:$0xff] %v827
                %v829 = vld [vmem:[%s819 + $0x20] sm:$0xff]
                %830 = vst [vmem:[%s820 + $0x20] sm:$0xff] %v829
                %v831 = vld [vmem:[%s819 + $0x28] sm:$0xff]
                %832 = vst [vmem:[%s820 + $0x28] sm:$0xff] %v831
                %v833 = vld [vmem:[%s819 + $0x30] sm:$0xff]
                %834 = vst [vmem:[%s820 + $0x30] sm:$0xff] %v833
                %v835 = vld [vmem:[%s819 + $0x38] sm:$0xff]
                %836 = vst [vmem:[%s820 + $0x38] sm:$0xff] %v835
                %s837 = sadd.s32 1, %s818
                %p838 = scmp.ge.s32.totalorder %s837, %s811
                %s839 = scalar_select %p838, 0, %s837
                %s840 = smul.u32 %s839, 64
                %s841 = smul.u32 %s839, 64
                %s842 = scalar_lea.vmem %s791, %s840 [#allocation4]
                %s843 = scalar_lea.vmem %s802, %s841
              $region73: #{gesture_classifier_forward.1} parent=67 // loop_footer
                %s815 = sadd.s32 %s813, 1
              $region74: #{gesture_classifier_forward.1} parent=67 // loop_footer_branch
                %812 = sbr.rel target = $region70
              $region75: #{gesture_classifier_forward.1} parent=67 // loop_exit
                _
              %s844 = sshrl.u32 %s798, 3
              %s845 = sand.u32 %s798, 7
              %s846 = smul.u32 %s844, 8
              %s847 = smul.u32 8, %s846
              %s848 = scalar_lea.vmem %s791, %s847 [#allocation4]
              %s849 = smul.u32 8, %s846
              %s850 = scalar_lea.vmem %s802, %s849
              // While loop
              $region76: #{gesture_classifier_forward.1} parent=67 // loop_pre_header
                _
              $region77: #{gesture_classifier_forward.1} parent=67 // loop_header
                %s852 = sphi 0, %s854
                %p853 = scmp.ge.s32.totalorder %s852, %s845
                %s857 = sphi 0, %s864
                %s858 = sphi %s848, %s867
                %s859 = sphi %s850, %s868
              $region78: #{gesture_classifier_forward.1} parent=67 // loop_header_branch
                %856 = sbr.rel (%p853) target = $region82
              $region79: #{gesture_classifier_forward.1} parent=67 // loop_body
                %v860 = vld [vmem:[%s858] sm:$0xff]
                %861 = vst [vmem:[%s859] sm:$0xff] %v860
                %s862 = sadd.s32 1, %s857
                %p863 = scmp.ge.s32.totalorder %s862, %s845
                %s864 = scalar_select %p863, 0, %s862
                %s865 = smul.u32 %s864, 8
                %s866 = smul.u32 %s864, 8
                %s867 = scalar_lea.vmem %s848, %s865 [#allocation4]
                %s868 = scalar_lea.vmem %s850, %s866
              $region80: #{gesture_classifier_forward.1} parent=67 // loop_footer
                %s854 = sadd.s32 %s852, 1
              $region81: #{gesture_classifier_forward.1} parent=67 // loop_footer_branch
                %851 = sbr.rel target = $region77
              $region82: #{gesture_classifier_forward.1} parent=67 // loop_exit
                _
            $region68: #{gesture_classifier_forward.1} parent=59 // pred_fallthru
              _
          $region60: #{gesture_classifier_forward.1} parent=55 // pred_fallthru
            _
          %931 = vnop
        $region56: #{gesture_classifier_forward.1} parent=47 // pred_fallthru
          _
      $region48: #{gesture_classifier_forward.1} parent=5 // pred_fallthru
        _
      %p932 = scmp.le.s32.totalorder 2, %s16
      // Predicated region
      $region105: #{gesture_classifier_forward.1} parent=5 // pred_check
        %p933 = pneg %p932
      $region106: #{gesture_classifier_forward.1} parent=5 // pred_check_branch
        %935 = sbr.rel (%p933) target = $region108
      $region107: #{gesture_classifier_forward.1} parent=5 // pred_region
        %s936 = ssub.s32 %s16, 2
        // Predicated region
        $region109: #{gesture_classifier_forward.1} parent=107 // pred_check
          %p937 = pneg %p197
        $region110: #{gesture_classifier_forward.1} parent=107 // pred_check_branch
          %939 = sbr.rel (%p937) target = $region112
        $region111: #{gesture_classifier_forward.1} parent=107 // pred_region
          %s940 = sand.u32 %s182, 1
          %s941 = sand.u32 %s182, 1
          %s942 = smul.addr %s941, 64
          %s943 = scalar_lea.vmem [#allocation4], %s942
        $region112: #{gesture_classifier_forward.1} parent=107 // pred_fallthru
          _
      $region108: #{gesture_classifier_forward.1} parent=5 // pred_fallthru
        _
    $region6: #{gesture_classifier_forward.1} parent=1 // loop_footer
      %s20 = sadd.s32 1, %s16
    $region7: #{gesture_classifier_forward.1} parent=1 // loop_footer_branch
      %15 = sbr.rel target = $region3
    $region8: #{gesture_classifier_forward.1} parent=1 // loop_exit
      _
    %944 = vsyncpa [#allocation3], 1
    %s945 = scalar_lea.sflag [#allocation3], 1
    %946 = vsyncpa %s945, 1

</llo_original>
